<compile_context>
chip_gen: v5e
topology: v5e:2x2
jax: 0.10.0
libtpu: 0.0.40
codegen_flags: <defaults>
</compile_context>

<pallas_src>
import math
import functools
import jax
import jax.numpy as jnp
from jax.experimental import pallas as pl
from jax.experimental.pallas import tpu as pltpu


# --------------------------------------------------------------------------- #
# Kernel
# --------------------------------------------------------------------------- #
def _mlp_gen_kernel(z_ref,
                    w1_ref, b1_ref,
                    w2_ref, b2_ref,
                    w3_ref, b3_ref,
                    w4_ref, b4_ref,
                    out_ref,
                    h_ref,
                    *, act_dtype):
    """Grid = (batch_tile i, out_column_tile j).  Layers 1-3 run once per i
    (j == 0) into the persistent VMEM scratch h_ref; every j runs only the
    layer-4 matmul on a column slice of W4."""
    mm_dtype = w1_ref.dtype                      # matmul input dtype (bf16 or f32)
    j = pl.program_id(1)

    @pl.when(j == 0)
    def _():
        x = z_ref[...].astype(mm_dtype)
        # Layer 1
        h = jnp.dot(x, w1_ref[...], preferred_element_type=jnp.float32) + b1_ref[...]
        h = jnp.tanh(h.astype(act_dtype))
        # Layer 2
        h = jnp.dot(h.astype(mm_dtype), w2_ref[...],
                    preferred_element_type=jnp.float32) + b2_ref[...]
        h = jnp.tanh(h.astype(act_dtype))
        # Layer 3
        h = jnp.dot(h.astype(mm_dtype), w3_ref[...],
                    preferred_element_type=jnp.float32) + b3_ref[...]
        h = jnp.tanh(h.astype(act_dtype))
        h_ref[...] = h.astype(h_ref.dtype)

    # Output layer (column tile j).
    o = jnp.dot(h_ref[...], w4_ref[...],
                preferred_element_type=jnp.float32) + b4_ref[...]
    out_ref[...] = jax.nn.sigmoid(o.astype(act_dtype)).astype(out_ref.dtype)


# --------------------------------------------------------------------------- #
# Wrapper helpers
# --------------------------------------------------------------------------- #
def _round_up(x, m):
    return ((x + m - 1) // m) * m


def _vmem_capacity_bytes():
    try:
        return int(pltpu.get_tpu_info().vmem_capacity_bytes)
    except Exception:
        return 64 << 20          # conservative fallback (v7x per-TC VMEM)


# --------------------------------------------------------------------------- #
# Wrapper
# --------------------------------------------------------------------------- #
def sheldon_mlp_generator_forward(z, params, *, img_dims, flat=None,
                                  default_flat_out=True,
                                  matmul_dtype=jnp.bfloat16,
                                  act_dtype=None, out_dtype=None):
    """Pallas forward.  `params` = dict of W1..W4 (in,out) and b1..b4 (1,out), f32.

    matmul_dtype=bfloat16 is the fast MXU path on v5e/v6e/v7x (f32 accumulate);
    pass matmul_dtype=jnp.float32 for PyTorch-exact f32 numerics."""
    B, zdim = z.shape
    hdim = params["W1"].shape[1]
    out_len = params["W4"].shape[1]

    mm_is_bf16 = jnp.dtype(matmul_dtype) == jnp.dtype(jnp.bfloat16)
    if act_dtype is None:                       # bf16 transcendentals on the fast path
        act_dtype = jnp.bfloat16 if mm_is_bf16 else jnp.float32
    if out_dtype is None:                       # bf16 writeback on the fast path
        out_dtype = jnp.bfloat16 if mm_is_bf16 else jnp.float32

    sub = 16 if mm_is_bf16 else 8               # sublane multiple for the LHS rows
    mm_bytes = jnp.dtype(matmul_dtype).itemsize
    ob_bytes = jnp.dtype(out_dtype).itemsize

    vmem_phys = _vmem_capacity_bytes()
    vmem_target = int(0.80 * vmem_phys)

    # ---- output column tiling (lane-dense, unmasked stores) ---------------- #
    out_pad128 = _round_up(out_len, 128)
    tn = out_pad128 if out_pad128 <= 1024 else 512
    out_pad = _round_up(out_len, tn)
    # TODO(synk): if tn is shrunk further it must stay a multiple of 128 that
    # divides out_pad; for very large hdim (>~4096) also add a hidden-dim (K)
    # grid axis with an f32 accumulator instead of keeping W1-W3 fully resident.

    # ---- batch tiling ------------------------------------------------------- #
    max_bm = 512 if vmem_phys >= (100 << 20) else 256     # 512 on v5e/v6e, 256 on v7x
    steps = max(1, -(-B // max_bm))
    if steps == 1 and B >= 256:
        steps = 2                                          # keep both v7x TCs busy
    if steps > 1 and steps % 2 == 1:
        if _round_up(-(-B // (steps + 1)), sub) >= 128:
            steps += 1                                     # even split across 2 TCs
    bm = _round_up(-(-B // steps), sub)

    # ---- VMEM accounting (resident W1-3 + pipelined tiles + scratch) -------- #
    def vmem_needed(bm_):
        resident = (zdim * hdim + 2 * hdim * hdim) * mm_bytes + 3 * hdim * 4
        w4_tiles = 2 * (hdim * tn * mm_bytes + tn * 4)     # double-buffered W4/b4 tile
        z_tiles = 2 * bm_ * max(zdim, 128) * 4             # double-buffered input tile
        o_tiles = 2 * bm_ * tn * ob_bytes                  # double-buffered output tile
        scratch = bm_ * hdim * mm_bytes                    # persistent h scratch
        act_live = 3 * bm_ * hdim * 4                      # live f32 intermediates
        return resident + w4_tiles + z_tiles + o_tiles + scratch + act_live + (2 << 20)

    while bm > sub and vmem_needed(bm) > vmem_target:
        bm = max(sub, _round_up(bm // 2, sub))

    B_pad = _round_up(B, bm)
    grid = (B_pad // bm, out_pad // tn)
    vmem_limit = int(min(max(vmem_needed(bm), 32 << 20), int(0.90 * vmem_phys)))

    # ---- pad / cast operands ------------------------------------------------ #
    W4, b4 = params["W4"], params["b4"]
    if out_pad != out_len:
        W4 = jnp.pad(W4, ((0, 0), (0, out_pad - out_len)))
        b4 = jnp.pad(b4, ((0, 0), (0, out_pad - out_len)))
    W1 = params["W1"].astype(matmul_dtype)
    W2 = params["W2"].astype(matmul_dtype)
    W3 = params["W3"].astype(matmul_dtype)
    W4 = W4.astype(matmul_dtype)
    b1, b2, b3 = params["b1"], params["b2"], params["b3"]          # biases stay f32
    z_in = z if B_pad == B else jnp.pad(z, ((0, B_pad - B), (0, 0)))

    vmem_full = pl.BlockSpec(memory_space=pltpu.MemorySpace.VMEM)  # resident, 1 buffer
    kernel = functools.partial(_mlp_gen_kernel, act_dtype=act_dtype)

    out = pl.pallas_call(
        kernel,
        out_shape=jax.ShapeDtypeStruct((B_pad, out_pad), out_dtype),
        grid_spec=pltpu.PrefetchScalarGridSpec(
            num_scalar_prefetch=0,
            grid=grid,
            in_specs=[
                pl.BlockSpec((bm, zdim), lambda i, j: (i, 0)),     # z (batch tile)
                vmem_full, vmem_full,                              # W1, b1 (resident)
                vmem_full, vmem_full,                              # W2, b2
                vmem_full, vmem_full,                              # W3, b3
                pl.BlockSpec((hdim, tn), lambda i, j: (0, j)),     # W4 column tile
                pl.BlockSpec((1, tn), lambda i, j: (0, j)),        # b4 column tile
            ],
            out_specs=pl.BlockSpec((bm, tn), lambda i, j: (i, j)),
            scratch_shapes=[pltpu.VMEM((bm, hdim), matmul_dtype)], # persistent h
        ),
        compiler_params=pltpu.CompilerParams(
            dimension_semantics=("parallel", "arbitrary"),
            vmem_limit_bytes=vmem_limit),
    )(z_in, W1, b1, W2, b2, W3, b3, W4, b4)

    out = out[:B, :out_len]                       # drop batch + lane padding

    # Same reshape condition as the PyTorch module.
    if (flat is None and (not default_flat_out)) or (flat is not None and (not flat)):
        out = out.reshape(B, *img_dims)
    return out


# --------------------------------------------------------------------------- #
# Params / reference (for the self-test)
# --------------------------------------------------------------------------- #
def init_params(key, zdim, hdim, out_len):
    """Deterministic init mimicking nn.Linear's U(-1/sqrt(fan_in), 1/sqrt(fan_in))."""
    def linear(k, fan_in, fan_out):
        kw, kb = jax.random.split(k)
        bound = 1.0 / math.sqrt(fan_in)
        W = jax.random.uniform(kw, (fan_in, fan_out), jnp.float32, -bound, bound)
        b = jax.random.uniform(kb, (1, fan_out), jnp.float32, -bound, bound)
        return W, b

    k1, k2, k3, k4 = jax.random.split(key, 4)
    W1, b1 = linear(k1, zdim, hdim)
    W2, b2 = linear(k2, hdim, hdim)
    W3, b3 = linear(k3, hdim, hdim)
    W4, b4 = linear(k4, hdim, out_len)
    return dict(W1=W1, b1=b1, W2=W2, b2=b2, W3=W3, b3=b3, W4=W4, b4=b4)


def _reference_forward(z, p):
    hp = jax.lax.Precision.HIGHEST
    h = jnp.tanh(jnp.dot(z, p["W1"], precision=hp) + p["b1"])
    h = jnp.tanh(jnp.dot(h, p["W2"], precision=hp) + p["b2"])
    h = jnp.tanh(jnp.dot(h, p["W3"], precision=hp) + p["b3"])
    return jax.nn.sigmoid(jnp.dot(h, p["W4"], precision=hp) + p["b4"])


# --------------------------------------------------------------------------- #
# Self-test
# --------------------------------------------------------------------------- #
if __name__ == "__main__":
    # Small shapes consistent with the module: zdim -> hdim x3 -> prod(img_dims)
    B = 16
    zdim = 32
    hdim = 128
    img_dims = (1, 8, 8)
    out_len = int(img_dims[0] * img_dims[1] * img_dims[2])   # 64 (< 128 -> padded)

    key = jax.random.PRNGKey(0)
    kp, kz = jax.random.split(key)
    params = init_params(kp, zdim, hdim, out_len)
    z = jax.random.normal(kz, (B, zdim), jnp.float32)

    ref = _reference_forward(z, params)

    # Exact-semantics path (f32 matmuls / activations / output).
    out_f32 = sheldon_mlp_generator_forward(z, params, img_dims=img_dims,
                                            matmul_dtype=jnp.float32)
    out_f32 = jax.block_until_ready(out_f32)
    assert out_f32.shape == (B, out_len), out_f32.shape
    assert jnp.allclose(out_f32, ref, atol=5e-4, rtol=0), \
        float(jnp.max(jnp.abs(out_f32 - ref)))

    # Default fast path (bf16 MXU inputs, bf16 activations/output, f32 accumulate).
    out_bf16 = sheldon_mlp_generator_forward(z, params, img_dims=img_dims)
    out_bf16 = jax.block_until_ready(out_bf16)
    assert out_bf16.shape == (B, out_len), out_bf16.shape
    assert jnp.allclose(out_bf16.astype(jnp.float32), ref, atol=3e-2, rtol=0), \
        float(jnp.max(jnp.abs(out_bf16.astype(jnp.float32) - ref)))

    # Un-flattened branch (flat=False -> reshape to image dims).
    out_img = sheldon_mlp_generator_forward(z, params, img_dims=img_dims,
                                            flat=False, matmul_dtype=jnp.float32)
    out_img = jax.block_until_ready(out_img)
    assert out_img.shape == (B,) + img_dims, out_img.shape
    assert jnp.allclose(out_img.reshape(B, out_len), ref, atol=5e-4, rtol=0)

    print("KERNEL_OK")
</pallas_src>

<mosaic_0001>
module attributes {stable_mosaic.version = 11 : i64} {
  func.func @_mlp_gen_kernel(%arg0: i32, %arg1: i32, %arg2: memref<16x32xf32, #tpu.memory_space<vmem>>, %arg3: memref<32x128xf32, #tpu.memory_space<vmem>>, %arg4: memref<1x128xf32, #tpu.memory_space<vmem>>, %arg5: memref<128x128xf32, #tpu.memory_space<vmem>>, %arg6: memref<1x128xf32, #tpu.memory_space<vmem>>, %arg7: memref<128x128xf32, #tpu.memory_space<vmem>>, %arg8: memref<1x128xf32, #tpu.memory_space<vmem>>, %arg9: memref<128x128xf32, #tpu.memory_space<vmem>>, %arg10: memref<1x128xf32, #tpu.memory_space<vmem>>, %arg11: memref<16x128xf32, #tpu.memory_space<vmem>>, %arg12: memref<16x128xf32, #tpu.memory_space<vmem>>) attributes {dimension_semantics = [#tpu.dimension_semantics<parallel>, #tpu.dimension_semantics<arbitrary>], iteration_bounds = array<i64: 1, 1>, scalar_prefetch = 0 : i64, scratch_operands = 1 : i64, tpu.core_type = #tpu.core_type<tc>, window_params = [{transform_indices = @transform_0, window_bounds = array<i64: 16, 32>}, {pipeline_mode = #tpu.pipeline_mode<synchronous>, transform_indices = @transform_1, window_bounds = array<i64: 32, 128>}, {pipeline_mode = #tpu.pipeline_mode<synchronous>, transform_indices = @transform_2, window_bounds = array<i64: 1, 128>}, {pipeline_mode = #tpu.pipeline_mode<synchronous>, transform_indices = @transform_3, window_bounds = array<i64: 128, 128>}, {pipeline_mode = #tpu.pipeline_mode<synchronous>, transform_indices = @transform_4, window_bounds = array<i64: 1, 128>}, {pipeline_mode = #tpu.pipeline_mode<synchronous>, transform_indices = @transform_5, window_bounds = array<i64: 128, 128>}, {pipeline_mode = #tpu.pipeline_mode<synchronous>, transform_indices = @transform_6, window_bounds = array<i64: 1, 128>}, {transform_indices = @transform_7, window_bounds = array<i64: 128, 128>}, {transform_indices = @transform_8, window_bounds = array<i64: 1, 128>}, {transform_indices = @transform_9, window_bounds = array<i64: 16, 128>}]} {
    %c0_i32 = arith.constant 0 : i32
    %0 = arith.cmpi eq, %arg1, %c0_i32 : i32
    %1 = arith.extui %0 : i1 to i32
    %c0_i32_0 = arith.constant 0 : i32
    %2 = arith.cmpi ne, %1, %c0_i32_0 : i32
    scf.if %2 {
      %c0_9 = arith.constant 0 : index
      %c0_10 = arith.constant 0 : index
      %15 = vector.load %arg2[%c0_9, %c0_10] : memref<16x32xf32, #tpu.memory_space<vmem>>, vector<16x32xf32>
      %c0_11 = arith.constant 0 : index
      %c0_12 = arith.constant 0 : index
      %16 = vector.load %arg3[%c0_11, %c0_12] : memref<32x128xf32, #tpu.memory_space<vmem>>, vector<32x128xf32>
      %cst_13 = arith.constant dense<0.000000e+00> : vector<16x128xf32>
      %17 = tpu.matmul %15, %16, %cst_13 {dimension_numbers = #tpu.dot_dimension_numbers<[1], [0], [0], [1], [0, 0, 1, 1], [], []>} : vector<16x32xf32>, vector<32x128xf32>, vector<16x128xf32> -> vector<16x128xf32>
      %c0_14 = arith.constant 0 : index
      %c0_15 = arith.constant 0 : index
      %18 = vector.load %arg4[%c0_14, %c0_15] : memref<1x128xf32, #tpu.memory_space<vmem>>, vector<1x128xf32>
      %19 = vector.broadcast %18 : vector<1x128xf32> to vector<16x128xf32>
      %20 = arith.addf %17, %19 : vector<16x128xf32>
      %21 = math.tanh %20 : vector<16x128xf32>
      %c0_16 = arith.constant 0 : index
      %c0_17 = arith.constant 0 : index
      %22 = vector.load %arg5[%c0_16, %c0_17] : memref<128x128xf32, #tpu.memory_space<vmem>>, vector<128x128xf32>
      %cst_18 = arith.constant dense<0.000000e+00> : vector<16x128xf32>
      %23 = tpu.matmul %21, %22, %cst_18 {dimension_numbers = #tpu.dot_dimension_numbers<[1], [0], [0], [1], [0, 0, 1, 1], [], []>} : vector<16x128xf32>, vector<128x128xf32>, vector<16x128xf32> -> vector<16x128xf32>
      %c0_19 = arith.constant 0 : index
      %c0_20 = arith.constant 0 : index
      %24 = vector.load %arg6[%c0_19, %c0_20] : memref<1x128xf32, #tpu.memory_space<vmem>>, vector<1x128xf32>
      %25 = vector.broadcast %24 : vector<1x128xf32> to vector<16x128xf32>
      %26 = arith.addf %23, %25 : vector<16x128xf32>
      %27 = math.tanh %26 : vector<16x128xf32>
      %c0_21 = arith.constant 0 : index
      %c0_22 = arith.constant 0 : index
      %28 = vector.load %arg7[%c0_21, %c0_22] : memref<128x128xf32, #tpu.memory_space<vmem>>, vector<128x128xf32>
      %cst_23 = arith.constant dense<0.000000e+00> : vector<16x128xf32>
      %29 = tpu.matmul %27, %28, %cst_23 {dimension_numbers = #tpu.dot_dimension_numbers<[1], [0], [0], [1], [0, 0, 1, 1], [], []>} : vector<16x128xf32>, vector<128x128xf32>, vector<16x128xf32> -> vector<16x128xf32>
      %c0_24 = arith.constant 0 : index
      %c0_25 = arith.constant 0 : index
      %30 = vector.load %arg8[%c0_24, %c0_25] : memref<1x128xf32, #tpu.memory_space<vmem>>, vector<1x128xf32>
      %31 = vector.broadcast %30 : vector<1x128xf32> to vector<16x128xf32>
      %32 = arith.addf %29, %31 : vector<16x128xf32>
      %33 = math.tanh %32 : vector<16x128xf32>
      %c0_26 = arith.constant 0 : index
      %c0_27 = arith.constant 0 : index
      %34 = vector.load %arg12[%c0_26, %c0_27] : memref<16x128xf32, #tpu.memory_space<vmem>>, vector<16x128xf32>
      tpu.vector_store %arg12[%c0_26, %c0_27], %33 {strides = array<i32>} : memref<16x128xf32, #tpu.memory_space<vmem>>, vector<16x128xf32>,
    } else {
    }
    %c0 = arith.constant 0 : index
    %c0_1 = arith.constant 0 : index
    %3 = vector.load %arg12[%c0, %c0_1] : memref<16x128xf32, #tpu.memory_space<vmem>>, vector<16x128xf32>
    %c0_2 = arith.constant 0 : index
    %c0_3 = arith.constant 0 : index
    %4 = vector.load %arg9[%c0_2, %c0_3] : memref<128x128xf32, #tpu.memory_space<vmem>>, vector<128x128xf32>
    %cst = arith.constant dense<0.000000e+00> : vector<16x128xf32>
    %5 = tpu.matmul %3, %4, %cst {dimension_numbers = #tpu.dot_dimension_numbers<[1], [0], [0], [1], [0, 0, 1, 1], [], []>} : vector<16x128xf32>, vector<128x128xf32>, vector<16x128xf32> -> vector<16x128xf32>
    %c0_4 = arith.constant 0 : index
    %c0_5 = arith.constant 0 : index
    %6 = vector.load %arg10[%c0_4, %c0_5] : memref<1x128xf32, #tpu.memory_space<vmem>>, vector<1x128xf32>
    %7 = vector.broadcast %6 : vector<1x128xf32> to vector<16x128xf32>
    %8 = arith.addf %5, %7 : vector<16x128xf32>
    %9 = arith.negf %8 : vector<16x128xf32>
    %10 = math.exp %9 : vector<16x128xf32>
    %cst_6 = arith.constant 1.000000e+00 : f32
    %11 = vector.broadcast %cst_6 : f32 to vector<16x128xf32>
    %12 = arith.addf %11, %10 : vector<16x128xf32>
    %13 = arith.divf %11, %12 : vector<16x128xf32>
    %c0_7 = arith.constant 0 : index
    %c0_8 = arith.constant 0 : index
    %14 = vector.load %arg11[%c0_7, %c0_8] : memref<16x128xf32, #tpu.memory_space<vmem>>, vector<16x128xf32>
    tpu.vector_store %arg11[%c0_7, %c0_8], %13 {strides = array<i32>} : memref<16x128xf32, #tpu.memory_space<vmem>>, vector<16x128xf32>,
    return
  }
  func.func @transform_0(%arg0: i32, %arg1: i32) -> (i32, i32) {
    %c0_i32 = arith.constant 0 : i32
    %c0_i32_0 = arith.constant 0 : i32
    return %arg0, %c0_i32 : i32, i32
  }
  func.func @transform_1(%arg0: i32, %arg1: i32) -> (i32, i32) {
    %c0_i32 = arith.constant 0 : i32
    %c0_i32_0 = arith.constant 0 : i32
    %c0_i32_1 = arith.constant 0 : i32
    return %c0_i32, %c0_i32_0 : i32, i32
  }
  func.func @transform_2(%arg0: i32, %arg1: i32) -> (i32, i32) {
    %c0_i32 = arith.constant 0 : i32
    %c0_i32_0 = arith.constant 0 : i32
    %c0_i32_1 = arith.constant 0 : i32
    return %c0_i32, %c0_i32_0 : i32, i32
  }
  func.func @transform_3(%arg0: i32, %arg1: i32) -> (i32, i32) {
    %c0_i32 = arith.constant 0 : i32
    %c0_i32_0 = arith.constant 0 : i32
    %c0_i32_1 = arith.constant 0 : i32
    return %c0_i32, %c0_i32_0 : i32, i32
  }
  func.func @transform_4(%arg0: i32, %arg1: i32) -> (i32, i32) {
    %c0_i32 = arith.constant 0 : i32
    %c0_i32_0 = arith.constant 0 : i32
    %c0_i32_1 = arith.constant 0 : i32
    return %c0_i32, %c0_i32_0 : i32, i32
  }
  func.func @transform_5(%arg0: i32, %arg1: i32) -> (i32, i32) {
    %c0_i32 = arith.constant 0 : i32
    %c0_i32_0 = arith.constant 0 : i32
    %c0_i32_1 = arith.constant 0 : i32
    return %c0_i32, %c0_i32_0 : i32, i32
  }
  func.func @transform_6(%arg0: i32, %arg1: i32) -> (i32, i32) {
    %c0_i32 = arith.constant 0 : i32
    %c0_i32_0 = arith.constant 0 : i32
    %c0_i32_1 = arith.constant 0 : i32
    return %c0_i32, %c0_i32_0 : i32, i32
  }
  func.func @transform_7(%arg0: i32, %arg1: i32) -> (i32, i32) {
    %c0_i32 = arith.constant 0 : i32
    %c0_i32_0 = arith.constant 0 : i32
    return %c0_i32, %arg1 : i32, i32
  }
  func.func @transform_8(%arg0: i32, %arg1: i32) -> (i32, i32) {
    %c0_i32 = arith.constant 0 : i32
    %c0_i32_0 = arith.constant 0 : i32
    return %c0_i32, %arg1 : i32, i32
  }
  func.func @transform_9(%arg0: i32, %arg1: i32) -> (i32, i32) {
    %c0_i32 = arith.constant 0 : i32
    return %arg0, %arg1 : i32, i32
  }
}

</mosaic_0001>

<llo_original>
// kernel: tpu_custom_call.1
$region0: #{tpu_custom_call.1}
  #allocation0 [shape = 'u32[]', space=smem, size = 0x4, offset = 0x4, fixed_abs, tag = 'smem constant byte address 0x4 - core index']
  #allocation1 [shape = 'u32[72,128]{1,0:T(1,128)}', space=vmem, size = 0x9000, scoped, tag = 'internal scratch']
  #allocation2 [shape = 'f32[16,128]{1,0:T(8,128)}', space=vmem, size = 0x2000, scoped, tag = 'scratch operand']
  %s0 = inlined_call_operand.hbm [shape: f32[16,32], index: 0, kind: input, shape index: {}]
  %s1 = inlined_call_operand.hbm [shape: f32[32,128], index: 1, kind: input, shape index: {}]
  %s2 = inlined_call_operand.vmem [shape: f32[1,128], index: 2, kind: input, shape index: {}]
  %s3 = inlined_call_operand.hbm [shape: f32[128,128], index: 3, kind: input, shape index: {}]
  %s4 = inlined_call_operand.vmem [shape: f32[1,128], index: 4, kind: input, shape index: {}]
  %s5 = inlined_call_operand.hbm [shape: f32[128,128], index: 5, kind: input, shape index: {}]
  %s6 = inlined_call_operand.vmem [shape: f32[1,128], index: 6, kind: input, shape index: {}]
  %s7 = inlined_call_operand.hbm [shape: f32[128,128], index: 7, kind: input, shape index: {}]
  %s8 = inlined_call_operand.vmem [shape: f32[1,128], index: 8, kind: input, shape index: {}]
  %s9 = inlined_call_operand.hbm [shape: f32[16,128], index: 9, kind: output, shape index: {}]
  %s10 = sld [smem:[#allocation0]]
  $region70: #{tpu_custom_call.1} parent=0
    _
  %s12 = ssub.s32 1, %s10
  %s13 = scalar_select 0, %s12, %s10
  $region1: #{tpu_custom_call.1} parent=0
    #allocation3 [shape = 'u8[8192]{0}', space=vmem, size = 0x2000, scoped, tag = 'input window, operand 0, single buffered']
    #allocation4 [shape = 's32[1]{0}', space=sflag, size = 0x4, scoped, tag = 'scoped memory for tpu_custom_call.1']
    #allocation5 [shape = 's32[1]{0}', space=sflag, size = 0x4, scoped, tag = 'scoped memory for tpu_custom_call.1']
    #allocation6 [shape = 'u8[16384]{0}', space=vmem, size = 0x4000, scoped, tag = 'input window, operand 1, single buffered']
    #allocation7 [shape = 's32[1]{0}', space=sflag, size = 0x4, scoped, tag = 'scoped memory for tpu_custom_call.1']
    #allocation8 [shape = 'u8[65536]{0}', space=vmem, size = 0x10000, scoped, tag = 'input window, operand 3, single buffered']
    #allocation9 [shape = 'u8[65536]{0}', space=vmem, size = 0x10000, scoped, tag = 'input window, operand 5, single buffered']
    #allocation10 [shape = 's32[1]{0}', space=sflag, size = 0x4, scoped, tag = 'scoped memory for tpu_custom_call.1']
    #allocation11 [shape = 'u8[65536]{0}', space=vmem, size = 0x10000, scoped, tag = 'input window, operand 7, single buffered']
    #allocation12 [shape = 'u8[8192]{0}', space=vmem, size = 0x2000, scoped, tag = 'output window, operand 0, single buffered']
    %14 = vsyncpa [#allocation4], 0
    %15 = vsyncpa [#allocation7], 0
    %16 = vsyncpa [#allocation10], 0
    %17 = vsyncpa [#allocation5], 0
    // Predicated region
    $region2: #{tpu_custom_call.1} parent=1 // pred_check
      _
    $region3: #{tpu_custom_call.1} parent=1 // pred_check_branch
      %19 = sbr.rel (0) target = $region5
    $region4: #{tpu_custom_call.1} parent=1 // pred_region
      %21 = vsyncadd [#allocation4], 0
      %s22 = sshll.u32 %s0, 4
      %s23 = int_to_ptr.hbm [resolvable:$true] %s22
      %s24 = sshll.u32 [#allocation3], 4
      %s25 = int_to_ptr.vmem [resolvable:$true] %s24
      %30 = dma.hbm_to_vmem [thread:$0]  %s23, 256, %s25, [#allocation4], 128, 128, 8
    $region5: #{tpu_custom_call.1} parent=1 // pred_fallthru
      _
    // Predicated region
    $region6: #{tpu_custom_call.1} parent=1 // pred_check
      _
    $region7: #{tpu_custom_call.1} parent=1 // pred_check_branch
      %32 = sbr.rel (0) target = $region9
    $region8: #{tpu_custom_call.1} parent=1 // pred_region
      %34 = vsyncadd [#allocation7], 0
      %s35 = sshll.u32 %s1, 4
      %s36 = int_to_ptr.hbm [resolvable:$true] %s35
      %s37 = sshll.u32 [#allocation6], 4
      %s38 = int_to_ptr.vmem [resolvable:$true] %s37
      %43 = dma.hbm_to_vmem [thread:$0]  %s36, 512, %s38, [#allocation7], 128, 128, 8
    $region9: #{tpu_custom_call.1} parent=1 // pred_fallthru
      _
    // Predicated region
    $region10: #{tpu_custom_call.1} parent=1 // pred_check
      _
    $region11: #{tpu_custom_call.1} parent=1 // pred_check_branch
      %45 = sbr.rel (0) target = $region13
    $region12: #{tpu_custom_call.1} parent=1 // pred_region
      _
    $region13: #{tpu_custom_call.1} parent=1 // pred_fallthru
      _
    // Predicated region
    $region14: #{tpu_custom_call.1} parent=1 // pred_check
      _
    $region15: #{tpu_custom_call.1} parent=1 // pred_check_branch
      %47 = sbr.rel (0) target = $region17
    $region16: #{tpu_custom_call.1} parent=1 // pred_region
      %49 = vsyncadd [#allocation7], 0
      %s50 = sshll.u32 %s3, 4
      %s51 = int_to_ptr.hbm [resolvable:$true] %s50
      %s52 = sshll.u32 [#allocation8], 4
      %s53 = int_to_ptr.vmem [resolvable:$true] %s52
      %58 = dma.hbm_to_vmem [thread:$0]  %s51, 2048, %s53, [#allocation7], 128, 128, 8
    $region17: #{tpu_custom_call.1} parent=1 // pred_fallthru
      _
    // Predicated region
    $region18: #{tpu_custom_call.1} parent=1 // pred_check
      _
    $region19: #{tpu_custom_call.1} parent=1 // pred_check_branch
      %60 = sbr.rel (0) target = $region21
    $region20: #{tpu_custom_call.1} parent=1 // pred_region
      _
    $region21: #{tpu_custom_call.1} parent=1 // pred_fallthru
      _
    // Predicated region
    $region22: #{tpu_custom_call.1} parent=1 // pred_check
      _
    $region23: #{tpu_custom_call.1} parent=1 // pred_check_branch
      %62 = sbr.rel (0) target = $region25
    $region24: #{tpu_custom_call.1} parent=1 // pred_region
      %64 = vsyncadd [#allocation10], 0
      %s65 = sshll.u32 %s5, 4
      %s66 = int_to_ptr.hbm [resolvable:$true] %s65
      %s67 = sshll.u32 [#allocation9], 4
      %s68 = int_to_ptr.vmem [resolvable:$true] %s67
      %73 = dma.hbm_to_vmem [thread:$0]  %s66, 2048, %s68, [#allocation10], 128, 128, 8
    $region25: #{tpu_custom_call.1} parent=1 // pred_fallthru
      _
    // Predicated region
    $region26: #{tpu_custom_call.1} parent=1 // pred_check
      _
    $region27: #{tpu_custom_call.1} parent=1 // pred_check_branch
      %75 = sbr.rel (0) target = $region29
    $region28: #{tpu_custom_call.1} parent=1 // pred_region
      _
    $region29: #{tpu_custom_call.1} parent=1 // pred_fallthru
      _
    // Predicated region
    $region30: #{tpu_custom_call.1} parent=1 // pred_check
      _
    $region31: #{tpu_custom_call.1} parent=1 // pred_check_branch
      %77 = sbr.rel (0) target = $region33
    $region32: #{tpu_custom_call.1} parent=1 // pred_region
      %79 = vsyncadd [#allocation10], 0
      %s80 = sshll.u32 %s7, 4
      %s81 = int_to_ptr.hbm [resolvable:$true] %s80
      %s82 = sshll.u32 [#allocation11], 4
      %s83 = int_to_ptr.vmem [resolvable:$true] %s82
      %88 = dma.hbm_to_vmem [thread:$0]  %s81, 2048, %s83, [#allocation10], 128, 128, 8
    $region33: #{tpu_custom_call.1} parent=1 // pred_fallthru
      _
    // Predicated region
    $region34: #{tpu_custom_call.1} parent=1 // pred_check
      _
    $region35: #{tpu_custom_call.1} parent=1 // pred_check_branch
      %90 = sbr.rel (0) target = $region37
    $region36: #{tpu_custom_call.1} parent=1 // pred_region
      _
    $region37: #{tpu_custom_call.1} parent=1 // pred_fallthru
      _
    // Predicated region
    $region38: #{tpu_custom_call.1} parent=1 // pred_check
      _
    $region39: #{tpu_custom_call.1} parent=1 // pred_check_branch
      %92 = sbr.rel (0) target = $region41
    $region40: #{tpu_custom_call.1} parent=1 // pred_region
      %94 = dma.done [#allocation4], 256
    $region41: #{tpu_custom_call.1} parent=1 // pred_fallthru
      _
    // Predicated region
    $region42: #{tpu_custom_call.1} parent=1 // pred_check
      _
    $region43: #{tpu_custom_call.1} parent=1 // pred_check_branch
      %96 = sbr.rel (0) target = $region45
    $region44: #{tpu_custom_call.1} parent=1 // pred_region
      %98 = dma.done [#allocation7], 512
    $region45: #{tpu_custom_call.1} parent=1 // pred_fallthru
      _
    // Predicated region
    $region46: #{tpu_custom_call.1} parent=1 // pred_check
      _
    $region47: #{tpu_custom_call.1} parent=1 // pred_check_branch
      %100 = sbr.rel (0) target = $region49
    $region48: #{tpu_custom_call.1} parent=1 // pred_region
      %102 = dma.done [#allocation7], 2048
    $region49: #{tpu_custom_call.1} parent=1 // pred_fallthru
      _
    // Predicated region
    $region50: #{tpu_custom_call.1} parent=1 // pred_check
      _
    $region51: #{tpu_custom_call.1} parent=1 // pred_check_branch
      %104 = sbr.rel (0) target = $region53
    $region52: #{tpu_custom_call.1} parent=1 // pred_region
      %106 = dma.done [#allocation10], 2048
    $region53: #{tpu_custom_call.1} parent=1 // pred_fallthru
      _
    // Predicated region
    $region54: #{tpu_custom_call.1} parent=1 // pred_check
      _
    $region55: #{tpu_custom_call.1} parent=1 // pred_check_branch
      %108 = sbr.rel (0) target = $region57
    $region56: #{tpu_custom_call.1} parent=1 // pred_region
      %110 = dma.done [#allocation10], 2048
    $region57: #{tpu_custom_call.1} parent=1 // pred_fallthru
      _
    %p111 = scmp.eq.s32.totalorder 0, 0
    // Predicated region
    $region58: #{tpu_custom_call.1} parent=1 // pred_check
      %p112 = pneg %p111
    $region59: #{tpu_custom_call.1} parent=1 // pred_check_branch
      %114 = sbr.rel (%p112) target = $region61
    $region60: #{tpu_custom_call.1} parent=1 // pred_region
      %v115 = vld [vmem:[#allocation3] sm:$0xff]
      %v116 = vld [vmem:[#allocation3 + $0x8] sm:$0xff]
      %v117 = vld [vmem:[#allocation6] sm:$0xff]
      %v118 = vld [vmem:[#allocation6 + $0x8] sm:$0xff]
      %v119 = vld [vmem:[#allocation6 + $0x10] sm:$0xff]
      %v120 = vld [vmem:[#allocation6 + $0x18] sm:$0xff]
      %v121 = vld [vmem:[%s2] sm:$0x1]
      %v123 = vperm.slane %v121, 0
      %vm125 = vcmask 261120
      %v127 = vsel %vm125, %v115, 0
      %v130 = vsel %vm125, %v116, 0
      %132 = vmatpush.msra.mxu0 0.0
      %133 = vmatpush.msra.mxu0 0.0
      %134 = vmatpush.msra.mxu0 0.0
      %135 = vmatpush.msra.mxu0 0.0
      %136 = vmatpush.msra.mxu0 0.0
      %137 = vmatpush.msra.mxu0 0.0
      %138 = vmatpush.msra.mxu0 0.0
      %139 = vmatpush.msra.mxu0 0.0
      %140 = vmatpush.msra.mxu0 0.0
      %141 = vmatpush.msra.mxu0 0.0
      %142 = vmatpush.msra.mxu0 0.0
      %143 = vmatpush.msra.mxu0 0.0
      %144 = vmatpush.msra.mxu0 %v120
      %145 = vmatpush.msra.mxu0 %v119
      %146 = vmatpush.msra.mxu0 %v118
      %147 = vmatpush.msra.mxu0 %v117
      %148 = vmatmul.f32.gmra.mxu0 %v127
      %v149 = vpop.f32.mrf.mxu0
      %v150 = vadd.f32 %v123, %v149
      %151 = vmatmul.f32.gmra.mxu0 %v130
      %v152 = vpop.f32.mrf.mxu0
      %v153 = vadd.f32 %v123, %v152
      %154 = vdwg.mxu0
      %v155 = vtanh.pop %v150
      %v156 = vtanh.pop %v153
      %v157 = vld [vmem:[#allocation8] sm:$0xff]
      %v158 = vld [vmem:[#allocation8 + $0x8] sm:$0xff]
      %v159 = vld [vmem:[#allocation8 + $0x10] sm:$0xff]
      %v160 = vld [vmem:[#allocation8 + $0x18] sm:$0xff]
      %v161 = vld [vmem:[#allocation8 + $0x20] sm:$0xff]
      %v162 = vld [vmem:[#allocation8 + $0x28] sm:$0xff]
      %v163 = vld [vmem:[#allocation8 + $0x30] sm:$0xff]
      %v164 = vld [vmem:[#allocation8 + $0x38] sm:$0xff]
      %v165 = vld [vmem:[#allocation8 + $0x40] sm:$0xff]
      %v166 = vld [vmem:[#allocation8 + $0x48] sm:$0xff]
      %v167 = vld [vmem:[#allocation8 + $0x50] sm:$0xff]
      %v168 = vld [vmem:[#allocation8 + $0x58] sm:$0xff]
      %v169 = vld [vmem:[#allocation8 + $0x60] sm:$0xff]
      %v170 = vld [vmem:[#allocation8 + $0x68] sm:$0xff]
      %v171 = vld [vmem:[#allocation8 + $0x70] sm:$0xff]
      %v172 = vld [vmem:[#allocation8 + $0x78] sm:$0xff]
      %v173 = vld [vmem:[%s4] sm:$0x1]
      %v175 = vperm.slane %v173, 0
      %177 = vmatpush.msra.mxu0 %v172
      %178 = vmatpush.msra.mxu0 %v171
      %179 = vmatpush.msra.mxu0 %v170
      %180 = vmatpush.msra.mxu0 %v169
      %181 = vmatpush.msra.mxu0 %v168
      %182 = vmatpush.msra.mxu0 %v167
      %183 = vmatpush.msra.mxu0 %v166
      %184 = vmatpush.msra.mxu0 %v165
      %185 = vmatpush.msra.mxu0 %v164
      %186 = vmatpush.msra.mxu0 %v163
      %187 = vmatpush.msra.mxu0 %v162
      %188 = vmatpush.msra.mxu0 %v161
      %189 = vmatpush.msra.mxu0 %v160
      %190 = vmatpush.msra.mxu0 %v159
      %191 = vmatpush.msra.mxu0 %v158
      %192 = vmatpush.msra.mxu0 %v157
      %193 = vmatmul.f32.gmra.mxu0 %v155
      %v194 = vpop.f32.mrf.mxu0
      %v195 = vadd.f32 %v175, %v194
      %196 = vmatmul.f32.gmra.mxu0 %v156
      %v197 = vpop.f32.mrf.mxu0
      %v198 = vadd.f32 %v175, %v197
      %199 = vdwg.mxu0
      %v200 = vtanh.pop %v195
      %v201 = vtanh.pop %v198
      %v202 = vld [vmem:[#allocation9] sm:$0xff]
      %v203 = vld [vmem:[#allocation9 + $0x8] sm:$0xff]
      %v204 = vld [vmem:[#allocation9 + $0x10] sm:$0xff]
      %v205 = vld [vmem:[#allocation9 + $0x18] sm:$0xff]
      %v206 = vld [vmem:[#allocation9 + $0x20] sm:$0xff]
      %v207 = vld [vmem:[#allocation9 + $0x28] sm:$0xff]
      %v208 = vld [vmem:[#allocation9 + $0x30] sm:$0xff]
      %v209 = vld [vmem:[#allocation9 + $0x38] sm:$0xff]
      %v210 = vld [vmem:[#allocation9 + $0x40] sm:$0xff]
      %v211 = vld [vmem:[#allocation9 + $0x48] sm:$0xff]
      %v212 = vld [vmem:[#allocation9 + $0x50] sm:$0xff]
      %v213 = vld [vmem:[#allocation9 + $0x58] sm:$0xff]
      %v214 = vld [vmem:[#allocation9 + $0x60] sm:$0xff]
      %v215 = vld [vmem:[#allocation9 + $0x68] sm:$0xff]
      %v216 = vld [vmem:[#allocation9 + $0x70] sm:$0xff]
      %v217 = vld [vmem:[#allocation9 + $0x78] sm:$0xff]
      %v218 = vld [vmem:[%s6] sm:$0x1]
      %v220 = vperm.slane %v218, 0
      %222 = vmatpush.msra.mxu0 %v217
      %223 = vmatpush.msra.mxu0 %v216
      %224 = vmatpush.msra.mxu0 %v215
      %225 = vmatpush.msra.mxu0 %v214
      %226 = vmatpush.msra.mxu0 %v213
      %227 = vmatpush.msra.mxu0 %v212
      %228 = vmatpush.msra.mxu0 %v211
      %229 = vmatpush.msra.mxu0 %v210
      %230 = vmatpush.msra.mxu0 %v209
      %231 = vmatpush.msra.mxu0 %v208
      %232 = vmatpush.msra.mxu0 %v207
      %233 = vmatpush.msra.mxu0 %v206
      %234 = vmatpush.msra.mxu0 %v205
      %235 = vmatpush.msra.mxu0 %v204
      %236 = vmatpush.msra.mxu0 %v203
      %237 = vmatpush.msra.mxu0 %v202
      %238 = vmatmul.f32.gmra.mxu0 %v200
      %v239 = vpop.f32.mrf.mxu0
      %v240 = vadd.f32 %v220, %v239
      %241 = vmatmul.f32.gmra.mxu0 %v201
      %v242 = vpop.f32.mrf.mxu0
      %v243 = vadd.f32 %v220, %v242
      %244 = vdwg.mxu0
      %v245 = vtanh.pop %v240
      %v246 = vtanh.pop %v243
      %247 = vst [vmem:[#allocation2] sm:$0xff] %v245
      %248 = vst [vmem:[#allocation2 + $0x8] sm:$0xff] %v246
    $region61: #{tpu_custom_call.1} parent=1 // pred_fallthru
      _
    %v249 = vld [vmem:[#allocation2] sm:$0xff]
    %v250 = vld [vmem:[#allocation2 + $0x8] sm:$0xff]
    %v251 = vld [vmem:[#allocation11] sm:$0xff]
    %v252 = vld [vmem:[#allocation11 + $0x8] sm:$0xff]
    %v253 = vld [vmem:[#allocation11 + $0x10] sm:$0xff]
    %v254 = vld [vmem:[#allocation11 + $0x18] sm:$0xff]
    %v255 = vld [vmem:[#allocation11 + $0x20] sm:$0xff]
    %v256 = vld [vmem:[#allocation11 + $0x28] sm:$0xff]
    %v257 = vld [vmem:[#allocation11 + $0x30] sm:$0xff]
    %v258 = vld [vmem:[#allocation11 + $0x38] sm:$0xff]
    %v259 = vld [vmem:[#allocation11 + $0x40] sm:$0xff]
    %v260 = vld [vmem:[#allocation11 + $0x48] sm:$0xff]
    %v261 = vld [vmem:[#allocation11 + $0x50] sm:$0xff]
    %v262 = vld [vmem:[#allocation11 + $0x58] sm:$0xff]
    %v263 = vld [vmem:[#allocation11 + $0x60] sm:$0xff]
    %v264 = vld [vmem:[#allocation11 + $0x68] sm:$0xff]
    %v265 = vld [vmem:[#allocation11 + $0x70] sm:$0xff]
    %v266 = vld [vmem:[#allocation11 + $0x78] sm:$0xff]
    %v267 = vld [vmem:[%s8] sm:$0x1]
    %v269 = vperm.slane %v267, 0
    %271 = vmatpush.msra.mxu0 %v266
    %272 = vmatpush.msra.mxu0 %v265
    %273 = vmatpush.msra.mxu0 %v264
    %274 = vmatpush.msra.mxu0 %v263
    %275 = vmatpush.msra.mxu0 %v262
    %276 = vmatpush.msra.mxu0 %v261
    %277 = vmatpush.msra.mxu0 %v260
    %278 = vmatpush.msra.mxu0 %v259
    %279 = vmatpush.msra.mxu0 %v258
    %280 = vmatpush.msra.mxu0 %v257
    %281 = vmatpush.msra.mxu0 %v256
    %282 = vmatpush.msra.mxu0 %v255
    %283 = vmatpush.msra.mxu0 %v254
    %284 = vmatpush.msra.mxu0 %v253
    %285 = vmatpush.msra.mxu0 %v252
    %286 = vmatpush.msra.mxu0 %v251
    %287 = vmatmul.f32.gmra.mxu0 %v249
    %v288 = vpop.f32.mrf.mxu0
    %v289 = vadd.f32 %v269, %v288
    %290 = vmatmul.f32.gmra.mxu0 %v250
    %v291 = vpop.f32.mrf.mxu0
    %v292 = vadd.f32 %v269, %v291
    %293 = vdwg.mxu0
    %v294 = vxor.u32 %v289, 2147483648
    %v295 = vxor.u32 %v292, 2147483648
    %v296 = vmul.f32 %v294, 1.442695
    %v297 = vpow.pop %v296
    %v298 = vmul.f32 %v295, 1.442695
    %v299 = vpow.pop %v298
    %v300 = vadd.f32 %v297, 1.0
    %v301 = vadd.f32 %v299, 1.0
    %v302 = vrcp.pop %v300
    %v303 = vmul.f32 %v300, %v302
    %v304 = vsub.f32 1.0, %v303
    %v305 = vmul.f32 %v302, %v304
    %v306 = vadd.f32 %v302, %v305
    %vm307 = vweird.f32 %v300
    %vm308 = vweird.f32 %v302
    %vm309 = vmor %vm307, %vm308
    %v310 = vsel %vm309, %v302, %v306
    %v311 = vand.u32 2147483647, %v300
    %vm312 = vcmp.eq.f32.partialorder %v311, 8.507059e+37
    %v313 = vand.u32 %v300, 2147483648
    %v314 = vor.u32 1.1754944e-38, %v313
    %v315 = vsel %vm312, %v314, %v310
    %v316 = vmul.f32 1.0, %v315
    %v317 = vrcp.pop %v301
    %v318 = vmul.f32 %v301, %v317
    %v319 = vsub.f32 1.0, %v318
    %v320 = vmul.f32 %v317, %v319
    %v321 = vadd.f32 %v317, %v320
    %vm322 = vweird.f32 %v301
    %vm323 = vweird.f32 %v317
    %vm324 = vmor %vm322, %vm323
    %v325 = vsel %vm324, %v317, %v321
    %v326 = vand.u32 2147483647, %v301
    %vm327 = vcmp.eq.f32.partialorder %v326, 8.507059e+37
    %v328 = vand.u32 %v301, 2147483648
    %v329 = vor.u32 1.1754944e-38, %v328
    %v330 = vsel %vm327, %v329, %v325
    %v331 = vmul.f32 1.0, %v330
    %332 = vst [vmem:[#allocation12] sm:$0xff] %v316
    %333 = vst [vmem:[#allocation12 + $0x8] sm:$0xff] %v331
    // Predicated region
    $region62: #{tpu_custom_call.1} parent=1 // pred_check
      _
    $region63: #{tpu_custom_call.1} parent=1 // pred_check_branch
      %335 = sbr.rel (0) target = $region65
    $region64: #{tpu_custom_call.1} parent=1 // pred_region
      %337 = vsyncadd [#allocation5], 0
      %s338 = sshll.u32 [#allocation12], 4
      %s339 = int_to_ptr.vmem [resolvable:$true] %s338
      %s340 = sshll.u32 %s9, 4
      %s341 = int_to_ptr.hbm [resolvable:$true] %s340
      %346 = dma.vmem_to_hbm [thread:$0]  %s339, 256, %s341, [#allocation5], 128, 128, 8
    $region65: #{tpu_custom_call.1} parent=1 // pred_fallthru
      _
    // Predicated region
    $region66: #{tpu_custom_call.1} parent=1 // pred_check
      _
    $region67: #{tpu_custom_call.1} parent=1 // pred_check_branch
      %348 = sbr.rel (0) target = $region69
    $region68: #{tpu_custom_call.1} parent=1 // pred_region
      %350 = dma.done [#allocation5], 256
    $region69: #{tpu_custom_call.1} parent=1 // pred_fallthru
      _
    %351 = vsyncpa [#allocation4], 1
    %352 = vsyncpa [#allocation7], 1
    %353 = vsyncpa [#allocation10], 1
    %354 = vsyncpa [#allocation5], 1

</llo_original>
